<compile_context>
chip_gen: v6e
topology: v6e:2x2x1
jax: 0.10.0
libtpu: 0.0.40
codegen_flags: <defaults>
</compile_context>

<pallas_src>
import jax
import jax.numpy as jnp
from jax.experimental import pallas as pl
from jax.experimental.pallas import tpu as pltpu


def _locked_dropout_kernel(mask_ref, x_ref, o_ref):
    # mask_ref: (1, BH) float32, already scaled by 1/(1-p).
    # x_ref:    (TT, BH) in x.dtype.
    # Multiply in f32 (avoids bf16 quantization of the 1/(1-p) scale), then
    # cast back to the output dtype. Broadcast over the T tile's sublanes.
    o_ref[...] = (x_ref[...] * mask_ref[...]).astype(o_ref.dtype)


def locked_dropout(x, p, seed, training=True):
    """x: (T, B, H). Applies one scaled Bernoulli(1-p) mask to all T steps."""
    if (not training) or (not p):
        return x

    T, B, H = x.shape
    keep_prob = 1.0 - float(p)
    scale = 1.0 / keep_prob
    BH = B * H

    # Lane/sublane-dense 2D layout: (T, B*H). Row-major reshape is a view.
    x2d = x.reshape(T, BH)

    # Single "locked" mask, pre-scaled, kept in f32 for the multiply.
    key = jax.random.PRNGKey(seed)
    keep = jax.random.bernoulli(key, keep_prob, (1, BH))
    mask = keep.astype(jnp.float32) * jnp.float32(scale)

    # Tile many time steps per grid iteration: target ~2 MiB input tiles.
    bytes_per_elem = jnp.dtype(x.dtype).itemsize
    row_bytes = max(1, BH * bytes_per_elem)
    target_tile_bytes = 2 * 1024 * 1024
    TT = max(1, target_tile_bytes // row_bytes)
    if TT >= T:
        TT = T                               # full extent: always a valid block dim
    else:
        TT = min(T, max(8, (TT // 8) * 8))   # multiple of 8 for sublane tiling

    grid = (pl.cdiv(T, TT),)

    out2d = pl.pallas_call(
        _locked_dropout_kernel,
        out_shape=jax.ShapeDtypeStruct((T, BH), x.dtype),
        grid=grid,
        in_specs=[
            # Mask stays resident in VMEM (constant block index).
            pl.BlockSpec((1, BH), lambda i: (0, 0)),
            pl.BlockSpec((TT, BH), lambda i: (i, 0)),
        ],
        out_specs=pl.BlockSpec((TT, BH), lambda i: (i, 0)),
        compiler_params=pltpu.CompilerParams(
            dimension_semantics=("parallel",),
        ),
    )(mask, x2d)

    return out2d.reshape(T, B, H)


if __name__ == "__main__":
    key = jax.random.PRNGKey(0)
    T, B, H = 8, 4, 32
    x = jax.random.normal(key, (T, B, H), dtype=jnp.float32)

    p = 0.5
    out = locked_dropout(x, p=p, seed=1234, training=True)
    out = jax.block_until_ready(out)

    # Sanity checks: output values are either 0 or x / (1 - p), and the mask
    # is identical ("locked") across the time axis.
    scale = 1.0 / (1.0 - p)
    ratio = out / (x * scale)                  # ~1 where kept, 0 where dropped
    mask0 = jnp.round(ratio[0])
    assert bool(jnp.all((jnp.abs(ratio) < 1e-5) | (jnp.abs(ratio - 1.0) < 1e-5)))
    for t in range(T):
        assert bool(jnp.all(jnp.round(ratio[t]) == mask0)), "mask not locked over time"

    # Eval mode / p=0 passthrough.
    out_eval = jax.block_until_ready(locked_dropout(x, p=p, seed=1234, training=False))
    assert bool(jnp.all(out_eval == x))
    out_p0 = jax.block_until_ready(locked_dropout(x, p=0.0, seed=1234, training=True))
    assert bool(jnp.all(out_p0 == x))

    print("KERNEL_OK")
</pallas_src>

<mosaic_0001>
module attributes {stable_mosaic.version = 11 : i64} {
  func.func @_locked_dropout_kernel(%arg0: i32, %arg1: memref<1x128xf32, #tpu.memory_space<vmem>>, %arg2: memref<8x128xf32, #tpu.memory_space<vmem>>, %arg3: memref<8x128xf32, #tpu.memory_space<vmem>>) attributes {dimension_semantics = [#tpu.dimension_semantics<parallel>], iteration_bounds = array<i64: 1>, scalar_prefetch = 0 : i64, scratch_operands = 0 : i64, tpu.core_type = #tpu.core_type<tc>, window_params = [{pipeline_mode = #tpu.pipeline_mode<synchronous>, transform_indices = @transform_0, window_bounds = array<i64: 1, 128>}, {transform_indices = @transform_1, window_bounds = array<i64: 8, 128>}, {transform_indices = @transform_2, window_bounds = array<i64: 8, 128>}]} {
    %c0 = arith.constant 0 : index
    %c0_0 = arith.constant 0 : index
    %0 = vector.load %arg2[%c0, %c0_0] : memref<8x128xf32, #tpu.memory_space<vmem>>, vector<8x128xf32>
    %c0_1 = arith.constant 0 : index
    %c0_2 = arith.constant 0 : index
    %1 = vector.load %arg1[%c0_1, %c0_2] : memref<1x128xf32, #tpu.memory_space<vmem>>, vector<1x128xf32>
    %2 = vector.broadcast %1 : vector<1x128xf32> to vector<8x128xf32>
    %3 = arith.mulf %0, %2 : vector<8x128xf32>
    %c0_3 = arith.constant 0 : index
    %c0_4 = arith.constant 0 : index
    %4 = vector.load %arg3[%c0_3, %c0_4] : memref<8x128xf32, #tpu.memory_space<vmem>>, vector<8x128xf32>
    tpu.vector_store %arg3[%c0_3, %c0_4], %3 {strides = array<i32>} : memref<8x128xf32, #tpu.memory_space<vmem>>, vector<8x128xf32>,
    return
  }
  func.func @transform_0(%arg0: i32) -> (i32, i32) {
    %c0_i32 = arith.constant 0 : i32
    %c0_i32_0 = arith.constant 0 : i32
    %c0_i32_1 = arith.constant 0 : i32
    return %c0_i32, %c0_i32_0 : i32, i32
  }
  func.func @transform_1(%arg0: i32) -> (i32, i32) {
    %c0_i32 = arith.constant 0 : i32
    %c0_i32_0 = arith.constant 0 : i32
    return %arg0, %c0_i32 : i32, i32
  }
  func.func @transform_2(%arg0: i32) -> (i32, i32) {
    %c0_i32 = arith.constant 0 : i32
    %c0_i32_0 = arith.constant 0 : i32
    return %arg0, %c0_i32 : i32, i32
  }
}

</mosaic_0001>

<llo_original>
// kernel: tpu_custom_call.1
$region0: #{tpu_custom_call.1}
  #allocation0 [shape = 'u32[]', space=smem, size = 0x4, offset = 0x4, fixed_abs, tag = 'smem constant byte address 0x4 - core index']
  #allocation1 [shape = 'u32[144,128]{1,0:T(1,128)}', space=vmem, size = 0x12000, scoped, tag = 'internal scratch']
  %s0 = inlined_call_operand.hbm [shape: f32[1,128], index: 0, kind: input, shape index: {}]
  %s1 = inlined_call_operand.hbm [shape: f32[8,128], index: 1, kind: input, shape index: {}]
  %s2 = inlined_call_operand.hbm [shape: f32[8,128], index: 2, kind: output, shape index: {}]
  %s3 = sld [smem:[#allocation0]]
  $region26: #{tpu_custom_call.1} parent=0
    _
  %s5 = ssub.s32 1, %s3
  %s6 = scalar_select 0, %s5, %s3
  $region1: #{tpu_custom_call.1} parent=0
    #allocation2 [shape = 'u8[512]{0}', space=vmem, size = 0x400, scoped, tag = 'input window, operand 0, single buffered']
    #allocation3 [shape = 's32[1]{0}', space=sflag, size = 0x4, scoped, tag = 'scoped memory for tpu_custom_call.1']
    #allocation4 [shape = 's32[1]{0}', space=sflag, size = 0x4, scoped, tag = 'scoped memory for tpu_custom_call.1']
    #allocation5 [shape = 'u8[4096]{0}', space=vmem, size = 0x1000, scoped, tag = 'input window, operand 1, single buffered']
    #allocation6 [shape = 's32[1]{0}', space=sflag, size = 0x4, scoped, tag = 'scoped memory for tpu_custom_call.1']
    #allocation7 [shape = 'u8[4096]{0}', space=vmem, size = 0x1000, scoped, tag = 'output window, operand 0, single buffered']
    %7 = vsyncpa [#allocation3], 0
    %8 = vsyncpa [#allocation6], 0
    %9 = vsyncpa [#allocation4], 0
    // Predicated region
    $region2: #{tpu_custom_call.1} parent=1 // pred_check
      _
    $region3: #{tpu_custom_call.1} parent=1 // pred_check_branch
      %11 = sbr.rel (0) target = $region5
    $region4: #{tpu_custom_call.1} parent=1 // pred_region
      %s13 = ssub.s32 16, 16
      %14 = vsyncadd [#allocation3], %s13
      %s16 = sshll.u32 [#allocation2], 4
      %s17 = int_to_ptr.vmem [resolvable:$true] %s16
      %19 = dma.hbm_to_vmem [thread:$0]  %s0, 16, %s17, [#allocation3]
    $region5: #{tpu_custom_call.1} parent=1 // pred_fallthru
      _
    // Predicated region
    $region6: #{tpu_custom_call.1} parent=1 // pred_check
      _
    $region7: #{tpu_custom_call.1} parent=1 // pred_check_branch
      %21 = sbr.rel (0) target = $region9
    $region8: #{tpu_custom_call.1} parent=1 // pred_region
      %s23 = ssub.s32 128, 128
      %24 = vsyncadd [#allocation6], %s23
      %s26 = sshll.u32 [#allocation5], 4
      %s27 = int_to_ptr.vmem [resolvable:$true] %s26
      %29 = dma.hbm_to_vmem [thread:$0]  %s1, 128, %s27, [#allocation6]
    $region9: #{tpu_custom_call.1} parent=1 // pred_fallthru
      _
    // Predicated region
    $region10: #{tpu_custom_call.1} parent=1 // pred_check
      _
    $region11: #{tpu_custom_call.1} parent=1 // pred_check_branch
      %31 = sbr.rel (0) target = $region13
    $region12: #{tpu_custom_call.1} parent=1 // pred_region
      %32 = dma.done [#allocation3], 16
    $region13: #{tpu_custom_call.1} parent=1 // pred_fallthru
      _
    // Predicated region
    $region14: #{tpu_custom_call.1} parent=1 // pred_check
      _
    $region15: #{tpu_custom_call.1} parent=1 // pred_check_branch
      %34 = sbr.rel (0) target = $region17
    $region16: #{tpu_custom_call.1} parent=1 // pred_region
      %35 = dma.done [#allocation6], 128
    $region17: #{tpu_custom_call.1} parent=1 // pred_fallthru
      _
    %v36 = vld [vmem:[#allocation5] sm:$0xff]
    %v37 = vld [vmem:[#allocation2] sm:$0x1]
    %v39 = vlaneseq
    %v40 = vshrl.u32 %v39, 7
    %v41 = vsub.s32 0, %v40
    %v42 = vrot.slane %v37, %v41
    %v44 = vmul.f32 %v36, %v42
    %45 = vst [vmem:[#allocation7] sm:$0xff] %v44
    // Predicated region
    $region18: #{tpu_custom_call.1} parent=1 // pred_check
      _
    $region19: #{tpu_custom_call.1} parent=1 // pred_check_branch
      %47 = sbr.rel (0) target = $region21
    $region20: #{tpu_custom_call.1} parent=1 // pred_region
      %s49 = ssub.s32 128, 128
      %50 = vsyncadd [#allocation4], %s49
      %s52 = sshll.u32 [#allocation7], 4
      %s53 = int_to_ptr.vmem [resolvable:$true] %s52
      %55 = dma.vmem_to_hbm [thread:$0]  %s53, 128, %s2, [#allocation4]
    $region21: #{tpu_custom_call.1} parent=1 // pred_fallthru
      _
    // Predicated region
    $region22: #{tpu_custom_call.1} parent=1 // pred_check
      _
    $region23: #{tpu_custom_call.1} parent=1 // pred_check_branch
      %57 = sbr.rel (0) target = $region25
    $region24: #{tpu_custom_call.1} parent=1 // pred_region
      %58 = dma.done [#allocation4], 128
    $region25: #{tpu_custom_call.1} parent=1 // pred_fallthru
      _
    %59 = vsyncpa [#allocation3], 1
    %60 = vsyncpa [#allocation6], 1
    %61 = vsyncpa [#allocation4], 1

</llo_original>
